<compile_context>
chip_gen: v7x
topology: tpu7x:2x2x1
jax: 0.10.0
libtpu: 0.0.40
codegen_flags: <defaults>
</compile_context>

<pallas_src>
import functools

import jax
import jax.numpy as jnp
from jax.experimental import pallas as pl
from jax.experimental.pallas import tpu as pltpu


# --------------------------------------------------------------------------
# helpers
# --------------------------------------------------------------------------
def _round_up(x, m):
    return ((x + m - 1) // m) * m


def _pick_tile(n, cap=512):
    """Largest tile <= cap that divides n and satisfies TPU (8,128) tiling."""
    if n <= cap:
        return n
    for t in range(cap, 127, -1):
        if n % t == 0 and t % 128 == 0:
            return t
    return 0  # no good divisor: caller pads N up to a multiple of `cap`


# --------------------------------------------------------------------------
# Pallas kernels
# --------------------------------------------------------------------------
def rank_kernel(ahat_ref, x_ref, w_ref, out_ref, acc_ref):
    # scores = Ahat @ (X @ W_rank), tiled: i over output rows, k over columns.
    # The (tile, F) @ (F, H) projection is tiny; recomputing it per (i, k)
    # step is cheaper than a second kernel + an HBM round-trip for xw.
    @pl.when(pl.program_id(1) == 0)
    def _():
        acc_ref[...] = jnp.zeros_like(acc_ref)

    xw = jnp.dot(x_ref[...], w_ref[...],
                 preferred_element_type=jnp.float32)          # (tile, H) f32
    acc_ref[...] += jnp.dot(ahat_ref[...], xw.astype(jnp.bfloat16),
                            preferred_element_type=jnp.float32)

    @pl.when(pl.program_id(1) == pl.num_programs(1) - 1)
    def _():
        out_ref[...] = acc_ref[...]


def cocn_kernel(perm_ref, adj_ref, feat_ref, w_ref, b_ref, out_ref,
                *, num_heads, k_nodes):
    # One grid step handles M (batch*group) rows.  Pool-before-project:
    #   pooled_h = (perm_h / K)^T @ adj_h @ feat_h        (M, F) per head
    #   logits   = concat_h(pooled_h) @ W_flat + b        (M, C)
    #   out      = log_softmax(logits)                    (task 'single-class')
    inv_k = jnp.float32(1.0 / k_nodes)
    pooled_heads = []
    for hh in range(num_heads):
        perm = perm_ref[hh] * inv_k                       # (M, K)
        adj = adj_ref[hh]                                 # (M, K, K)
        feat = feat_ref[hh]                               # (M, K, F)
        # wadj[m, k] = sum_r perm[m, r] * adj[m, r, k]
        wadj = jnp.sum(perm[:, :, None] * adj, axis=1)    # (M, K)
        # pooled[m, f] = sum_k wadj[m, k] * feat[m, k, f]
        pooled_heads.append(jnp.sum(wadj[:, :, None] * feat, axis=1))  # (M, F)
    pooled = jnp.concatenate(pooled_heads, axis=-1)       # (M, H*F)
    logits = jnp.dot(pooled, w_ref[...],
                     preferred_element_type=jnp.float32) + b_ref[...]  # (M, C)
    mmax = jnp.max(logits, axis=-1, keepdims=True)
    lse = jnp.log(jnp.sum(jnp.exp(logits - mmax), axis=-1, keepdims=True)) + mmax
    out_ref[...] = logits - lse


# --------------------------------------------------------------------------
# Plain-JAX glue (graph bookkeeping, mirroring the PyTorch forward)
# --------------------------------------------------------------------------
def get_normalized_adj(edge_index, n, self_loop=1):
    a = jnp.zeros((n, n), jnp.float32).at[edge_index[0], edge_index[1]].set(1.0)
    a = a + float(self_loop) * jnp.eye(n, dtype=jnp.float32)
    d = jnp.clip(a.sum(-1), 1e-12, None)
    dinv = 1.0 / jnp.sqrt(d)
    return a * dinv[:, None] * dinv[None, :]


def topk_cocn_forward(x, edge_index, params, *, num_heads, j, k, num_classes):
    n, f = x.shape
    h, c = num_heads, num_classes
    b_s = 1                       # "Mini batches are not supported" assert
    bj = b_s * j

    x = x.astype(jnp.float32)
    ahat = get_normalized_adj(edge_index, n, self_loop=1)
    a_bin = jnp.zeros((n, n), jnp.float32).at[edge_index[0],
                                              edge_index[1]].set(1.0)

    # ---- ranking (Pallas):  scores = Ahat @ (X @ W_rank) -------------------
    tile = _pick_tile(n)
    if tile == 0:                 # awkward N: pad to a multiple of 512
        tile = 512
        n_pad = _round_up(n, tile)
    else:
        n_pad = n
    if n_pad != n:
        ahat_in = jnp.pad(ahat, ((0, n_pad - n), (0, n_pad - n)))
        x_in = jnp.pad(x, ((0, n_pad - n), (0, 0)))
    else:
        ahat_in, x_in = ahat, x

    # bf16 on the N^2 read halves HBM traffic; f32 MXU accumulation.
    scores_pad = pl.pallas_call(
        rank_kernel,
        out_shape=jax.ShapeDtypeStruct((n_pad, h), jnp.float32),
        grid=(n_pad // tile, n_pad // tile),
        in_specs=[pl.BlockSpec((tile, tile), lambda i, kk: (i, kk)),
                  pl.BlockSpec((tile, f), lambda i, kk: (kk, 0)),
                  pl.BlockSpec((f, h), lambda i, kk: (0, 0))],
        out_specs=pl.BlockSpec((tile, h), lambda i, kk: (i, 0)),
        scratch_shapes=[pltpu.VMEM((tile, h), jnp.float32)],
        compiler_params=pltpu.CompilerParams(
            dimension_semantics=("parallel", "arbitrary")),
    )(ahat_in.astype(jnp.bfloat16), x_in, params["w_rank"])
    scores = scores_pad[:n]

    # ---- perm_gen (JAX glue) ------------------------------------------------
    # TODO(synk): data-dependent argsort / top-k has no Pallas TPU primitive;
    # it stays in plain JAX.
    order = jnp.argsort(-scores, axis=0)                       # (N, H)
    top = order[: j * k, :]                                    # (j*k, H)
    sorted_idx = top.T.reshape(b_s, h, j, k)                   # (1, H, j, K)
    gathered = jnp.take_along_axis(scores, top, axis=0).T      # (H, j*k)
    perm_in = jax.nn.softmax(gathered.reshape(b_s, h, j, k), axis=-1)

    # ---- gathers, head-leading layout (H, BJ, ...) --------------------------
    feats_sel = x[sorted_idx.reshape(-1)].reshape(b_s, h, j, k, f)
    feat_hd = feats_sel[0]                                     # (H, BJ, K, F)
    idx_hd = sorted_idx[0]                                     # (H, BJ, K)
    adj_hd = a_bin[idx_hd[..., :, None], idx_hd[..., None, :]]  # (H, BJ, K, K)
    perm_hd = perm_in[0]                                       # (H, BJ, K)

    # ---- batch BJ rows per grid step (pad BJ up to the row tile) ------------
    m_tile = min(128, _round_up(bj, 8))
    bj_pad = _round_up(bj, m_tile)
    pad = bj_pad - bj
    if pad:
        perm_hd = jnp.pad(perm_hd, ((0, 0), (0, pad), (0, 0)))
        adj_hd = jnp.pad(adj_hd, ((0, 0), (0, pad), (0, 0), (0, 0)))
        feat_hd = jnp.pad(feat_hd, ((0, 0), (0, pad), (0, 0), (0, 0)))

    w_flat = params["w_cocn"].reshape(h * f, c)                # (H*F, C)

    # ---- cocn + log_softmax (Pallas, fused, M rows per grid step) -----------
    # TODO(synk): for production-size K/F, flatten trailing dims to a
    # lane-dense (BJ, H*K*K)/(BJ, H*K*F) layout to avoid K->128 lane padding.
    out = pl.pallas_call(
        functools.partial(cocn_kernel, num_heads=h, k_nodes=k),
        out_shape=jax.ShapeDtypeStruct((bj_pad, c), jnp.float32),
        grid=(bj_pad // m_tile,),
        in_specs=[
            pl.BlockSpec((h, m_tile, k), lambda i: (0, i, 0)),
            pl.BlockSpec((h, m_tile, k, k), lambda i: (0, i, 0, 0)),
            pl.BlockSpec((h, m_tile, k, f), lambda i: (0, i, 0, 0)),
            pl.BlockSpec((h * f, c), lambda i: (0, 0)),
            pl.BlockSpec((1, c), lambda i: (0, 0)),
        ],
        out_specs=pl.BlockSpec((m_tile, c), lambda i: (i, 0)),
        compiler_params=pltpu.CompilerParams(
            dimension_semantics=("parallel",)),
    )(perm_hd, adj_hd, feat_hd, w_flat, params["b_cocn"])

    # output.view(b_s, j, -1); squeeze(0) since output.ndim > data.x.ndim
    output = out[:bj].reshape(b_s, j, c)
    if output.ndim > x.ndim:
        output = output[0]
    return output


# --------------------------------------------------------------------------
if __name__ == "__main__":
    # Small, deterministic problem:
    #   N=16 nodes, F=8 features, H=2 heads, j=2 groups, K=8 nodes/group, C=4
    N, F, H, J, K, C = 16, 8, 2, 2, 8, 4

    key = jax.random.PRNGKey(0)
    k1, k2, k3, k4 = jax.random.split(key, 4)
    params = {
        "w_rank": 0.1 * jax.random.normal(k1, (F, H), jnp.float32),
        "w_cocn": 0.1 * jax.random.normal(k2, (H, F, C), jnp.float32),
        "b_cocn": 0.1 * jax.random.normal(k3, (1, C), jnp.float32),
    }
    x = jax.random.normal(k4, (N, F), jnp.float32)

    # deterministic ring-plus-chord graph (undirected, both directions)
    src = jnp.arange(N)
    d1 = (src + 1) % N
    d2 = (src + 3) % N
    edge_index = jnp.stack(
        [jnp.concatenate([src, d1, src, d2]),
         jnp.concatenate([d1, src, d2, src])], axis=0)          # (2, 4N)

    fwd = jax.jit(functools.partial(topk_cocn_forward,
                                    num_heads=H, j=J, k=K, num_classes=C))
    out = fwd(x, edge_index, params)
    out = jax.block_until_ready(out)
    assert out.shape == (J, C)
    # log_softmax rows must normalize to 1 in prob space
    assert bool(jnp.allclose(jnp.sum(jnp.exp(out), axis=-1), 1.0, atol=1e-4))
    print("KERNEL_OK")
</pallas_src>

<mosaic_0001>
module attributes {stable_mosaic.version = 11 : i64} {
  func.func @rank_kernel(%arg0: i32, %arg1: i32, %arg2: memref<16x16xbf16, #tpu.memory_space<vmem>>, %arg3: memref<16x8xf32, #tpu.memory_space<vmem>>, %arg4: memref<8x2xf32, #tpu.memory_space<vmem>>, %arg5: memref<16x2xf32, #tpu.memory_space<vmem>>, %arg6: memref<16x2xf32, #tpu.memory_space<vmem>>) attributes {dimension_semantics = [#tpu.dimension_semantics<parallel>, #tpu.dimension_semantics<arbitrary>], iteration_bounds = array<i64: 1, 1>, scalar_prefetch = 0 : i64, scratch_operands = 1 : i64, tpu.core_type = #tpu.core_type<tc>, window_params = [{transform_indices = @transform_0, window_bounds = array<i64: 16, 16>}, {transform_indices = @transform_1, window_bounds = array<i64: 16, 8>}, {pipeline_mode = #tpu.pipeline_mode<synchronous>, transform_indices = @transform_2, window_bounds = array<i64: 8, 2>}, {transform_indices = @transform_3, window_bounds = array<i64: 16, 2>}]} {
    %c0_i32 = arith.constant 0 : i32
    %0 = arith.cmpi eq, %arg1, %c0_i32 : i32
    %1 = arith.extui %0 : i1 to i32
    %c0_i32_0 = arith.constant 0 : i32
    %2 = arith.cmpi ne, %1, %c0_i32_0 : i32
    scf.if %2 {
      %cst_13 = arith.constant 0.000000e+00 : f32
      %15 = vector.broadcast %cst_13 : f32 to vector<16x2xf32>
      %c0_14 = arith.constant 0 : index
      %c0_15 = arith.constant 0 : index
      %16 = vector.load %arg6[%c0_14, %c0_15] : memref<16x2xf32, #tpu.memory_space<vmem>>, vector<16x2xf32>
      tpu.vector_store %arg6[%c0_14, %c0_15], %15 {strides = array<i32>} : memref<16x2xf32, #tpu.memory_space<vmem>>, vector<16x2xf32>,
    } else {
    }
    %c0 = arith.constant 0 : index
    %c0_1 = arith.constant 0 : index
    %3 = vector.load %arg3[%c0, %c0_1] : memref<16x8xf32, #tpu.memory_space<vmem>>, vector<16x8xf32>
    %c0_2 = arith.constant 0 : index
    %c0_3 = arith.constant 0 : index
    %4 = vector.load %arg4[%c0_2, %c0_3] : memref<8x2xf32, #tpu.memory_space<vmem>>, vector<8x2xf32>
    %cst = arith.constant dense<0.000000e+00> : vector<16x2xf32>
    %5 = tpu.matmul %3, %4, %cst {dimension_numbers = #tpu.dot_dimension_numbers<[1], [0], [0], [1], [0, 0, 1, 1], [], []>} : vector<16x8xf32>, vector<8x2xf32>, vector<16x2xf32> -> vector<16x2xf32>
    %c0_4 = arith.constant 0 : index
    %c0_5 = arith.constant 0 : index
    %6 = vector.load %arg6[%c0_4, %c0_5] : memref<16x2xf32, #tpu.memory_space<vmem>>, vector<16x2xf32>
    %c0_6 = arith.constant 0 : index
    %c0_7 = arith.constant 0 : index
    %7 = vector.load %arg2[%c0_6, %c0_7] : memref<16x16xbf16, #tpu.memory_space<vmem>>, vector<16x16xbf16>
    %8 = arith.truncf %5 : vector<16x2xf32> to vector<16x2xbf16>
    %cst_8 = arith.constant dense<0.000000e+00> : vector<16x2xf32>
    %9 = tpu.matmul %7, %8, %cst_8 {dimension_numbers = #tpu.dot_dimension_numbers<[1], [0], [0], [1], [0, 0, 1, 1], [], []>} : vector<16x16xbf16>, vector<16x2xbf16>, vector<16x2xf32> -> vector<16x2xf32>
    %10 = arith.addf %6, %9 : vector<16x2xf32>
    %c0_9 = arith.constant 0 : index
    %c0_10 = arith.constant 0 : index
    %11 = vector.load %arg6[%c0_9, %c0_10] : memref<16x2xf32, #tpu.memory_space<vmem>>, vector<16x2xf32>
    tpu.vector_store %arg6[%c0_9, %c0_10], %10 {strides = array<i32>} : memref<16x2xf32, #tpu.memory_space<vmem>>, vector<16x2xf32>,
    %c0_i32_11 = arith.constant 0 : i32
    %12 = arith.cmpi eq, %arg1, %c0_i32_11 : i32
    %13 = arith.extui %12 : i1 to i32
    %c0_i32_12 = arith.constant 0 : i32
    %14 = arith.cmpi ne, %13, %c0_i32_12 : i32
    scf.if %14 {
      %c0_13 = arith.constant 0 : index
      %c0_14 = arith.constant 0 : index
      %15 = vector.load %arg6[%c0_13, %c0_14] : memref<16x2xf32, #tpu.memory_space<vmem>>, vector<16x2xf32>
      %c0_15 = arith.constant 0 : index
      %c0_16 = arith.constant 0 : index
      %16 = vector.load %arg5[%c0_15, %c0_16] : memref<16x2xf32, #tpu.memory_space<vmem>>, vector<16x2xf32>
      tpu.vector_store %arg5[%c0_15, %c0_16], %15 {strides = array<i32>} : memref<16x2xf32, #tpu.memory_space<vmem>>, vector<16x2xf32>,
    } else {
    }
    return
  }
  func.func @transform_0(%arg0: i32, %arg1: i32) -> (i32, i32) {
    %c0_i32 = arith.constant 0 : i32
    return %arg0, %arg1 : i32, i32
  }
  func.func @transform_1(%arg0: i32, %arg1: i32) -> (i32, i32) {
    %c0_i32 = arith.constant 0 : i32
    %c0_i32_0 = arith.constant 0 : i32
    return %arg1, %c0_i32 : i32, i32
  }
  func.func @transform_2(%arg0: i32, %arg1: i32) -> (i32, i32) {
    %c0_i32 = arith.constant 0 : i32
    %c0_i32_0 = arith.constant 0 : i32
    %c0_i32_1 = arith.constant 0 : i32
    return %c0_i32, %c0_i32_0 : i32, i32
  }
  func.func @transform_3(%arg0: i32, %arg1: i32) -> (i32, i32) {
    %c0_i32 = arith.constant 0 : i32
    %c0_i32_0 = arith.constant 0 : i32
    return %arg0, %c0_i32 : i32, i32
  }
}

module attributes {stable_mosaic.version = 11 : i64} {
  func.func @cocn_kernel(%arg0: i32, %arg1: memref<2x8x8xf32, #tpu.memory_space<vmem>>, %arg2: memref<2x8x8x8xf32, #tpu.memory_space<vmem>>, %arg3: memref<2x8x8x8xf32, #tpu.memory_space<vmem>>, %arg4: memref<16x4xf32, #tpu.memory_space<vmem>>, %arg5: memref<1x4xf32, #tpu.memory_space<vmem>>, %arg6: memref<8x4xf32, #tpu.memory_space<vmem>>) attributes {dimension_semantics = [#tpu.dimension_semantics<parallel>], iteration_bounds = array<i64: 1>, scalar_prefetch = 0 : i64, scratch_operands = 0 : i64, tpu.core_type = #tpu.core_type<tc>, window_params = [{transform_indices = @transform_0, window_bounds = array<i64: 2, 8, 8>}, {transform_indices = @transform_1, window_bounds = array<i64: 2, 8, 8, 8>}, {transform_indices = @transform_2, window_bounds = array<i64: 2, 8, 8, 8>}, {pipeline_mode = #tpu.pipeline_mode<synchronous>, transform_indices = @transform_3, window_bounds = array<i64: 16, 4>}, {pipeline_mode = #tpu.pipeline_mode<synchronous>, transform_indices = @transform_4, window_bounds = array<i64: 1, 4>}, {transform_indices = @transform_5, window_bounds = array<i64: 8, 4>}]} {
    %c0 = arith.constant 0 : index
    %c0_0 = arith.constant 0 : index
    %c0_1 = arith.constant 0 : index
    %0 = vector.load %arg1[%c0, %c0_0, %c0_1] : memref<2x8x8xf32, #tpu.memory_space<vmem>>, vector<1x8x8xf32>
    %1 = vector.shape_cast %0 : vector<1x8x8xf32> to vector<8x8xf32>
    %cst = arith.constant 1.250000e-01 : f32
    %2 = vector.broadcast %cst : f32 to vector<8x8xf32>
    %3 = arith.mulf %1, %2 : vector<8x8xf32>
    %c0_2 = arith.constant 0 : index
    %c0_3 = arith.constant 0 : index
    %c0_4 = arith.constant 0 : index
    %c0_5 = arith.constant 0 : index
    %4 = vector.load %arg2[%c0_2, %c0_3, %c0_4, %c0_5] : memref<2x8x8x8xf32, #tpu.memory_space<vmem>>, vector<1x8x8x8xf32>
    %5 = vector.shape_cast %4 : vector<1x8x8x8xf32> to vector<8x8x8xf32>
    %c0_6 = arith.constant 0 : index
    %c0_7 = arith.constant 0 : index
    %c0_8 = arith.constant 0 : index
    %c0_9 = arith.constant 0 : index
    %6 = vector.load %arg3[%c0_6, %c0_7, %c0_8, %c0_9] : memref<2x8x8x8xf32, #tpu.memory_space<vmem>>, vector<1x8x8x8xf32>
    %7 = vector.shape_cast %6 : vector<1x8x8x8xf32> to vector<8x8x8xf32>
    %8 = vector.shape_cast %3 : vector<8x8xf32> to vector<8x8x1xf32>
    %9 = vector.broadcast %8 : vector<8x8x1xf32> to vector<8x8x8xf32>
    %10 = arith.mulf %9, %5 : vector<8x8x8xf32>
    %cst_10 = arith.constant dense<0.000000e+00> : vector<8x8xf32>
    %11 = vector.multi_reduction <add>, %10, %cst_10 [1] : vector<8x8x8xf32> to vector<8x8xf32>
    %12 = vector.shape_cast %11 : vector<8x8xf32> to vector<8x8x1xf32>
    %13 = vector.broadcast %12 : vector<8x8x1xf32> to vector<8x8x8xf32>
    %14 = arith.mulf %13, %7 : vector<8x8x8xf32>
    %cst_11 = arith.constant dense<0.000000e+00> : vector<8x8xf32>
    %15 = vector.multi_reduction <add>, %14, %cst_11 [1] : vector<8x8x8xf32> to vector<8x8xf32>
    %c1 = arith.constant 1 : index
    %c0_12 = arith.constant 0 : index
    %c0_13 = arith.constant 0 : index
    %16 = vector.load %arg1[%c1, %c0_12, %c0_13] : memref<2x8x8xf32, #tpu.memory_space<vmem>>, vector<1x8x8xf32>
    %17 = vector.shape_cast %16 : vector<1x8x8xf32> to vector<8x8xf32>
    %cst_14 = arith.constant 1.250000e-01 : f32
    %18 = vector.broadcast %cst_14 : f32 to vector<8x8xf32>
    %19 = arith.mulf %17, %18 : vector<8x8xf32>
    %c1_15 = arith.constant 1 : index
    %c0_16 = arith.constant 0 : index
    %c0_17 = arith.constant 0 : index
    %c0_18 = arith.constant 0 : index
    %20 = vector.load %arg2[%c1_15, %c0_16, %c0_17, %c0_18] : memref<2x8x8x8xf32, #tpu.memory_space<vmem>>, vector<1x8x8x8xf32>
    %21 = vector.shape_cast %20 : vector<1x8x8x8xf32> to vector<8x8x8xf32>
    %c1_19 = arith.constant 1 : index
    %c0_20 = arith.constant 0 : index
    %c0_21 = arith.constant 0 : index
    %c0_22 = arith.constant 0 : index
    %22 = vector.load %arg3[%c1_19, %c0_20, %c0_21, %c0_22] : memref<2x8x8x8xf32, #tpu.memory_space<vmem>>, vector<1x8x8x8xf32>
    %23 = vector.shape_cast %22 : vector<1x8x8x8xf32> to vector<8x8x8xf32>
    %24 = vector.shape_cast %19 : vector<8x8xf32> to vector<8x8x1xf32>
    %25 = vector.broadcast %24 : vector<8x8x1xf32> to vector<8x8x8xf32>
    %26 = arith.mulf %25, %21 : vector<8x8x8xf32>
    %cst_23 = arith.constant dense<0.000000e+00> : vector<8x8xf32>
    %27 = vector.multi_reduction <add>, %26, %cst_23 [1] : vector<8x8x8xf32> to vector<8x8xf32>
    %28 = vector.shape_cast %27 : vector<8x8xf32> to vector<8x8x1xf32>
    %29 = vector.broadcast %28 : vector<8x8x1xf32> to vector<8x8x8xf32>
    %30 = arith.mulf %29, %23 : vector<8x8x8xf32>
    %cst_24 = arith.constant dense<0.000000e+00> : vector<8x8xf32>
    %31 = vector.multi_reduction <add>, %30, %cst_24 [1] : vector<8x8x8xf32> to vector<8x8xf32>
    %32 = tpu.concatenate %15, %31 in 1 : vector<8x8xf32>, vector<8x8xf32> -> vector<8x16xf32>
    %c0_25 = arith.constant 0 : index
    %c0_26 = arith.constant 0 : index
    %33 = vector.load %arg4[%c0_25, %c0_26] : memref<16x4xf32, #tpu.memory_space<vmem>>, vector<16x4xf32>
    %cst_27 = arith.constant dense<0.000000e+00> : vector<8x4xf32>
    %34 = tpu.matmul %32, %33, %cst_27 {dimension_numbers = #tpu.dot_dimension_numbers<[1], [0], [0], [1], [0, 0, 1, 1], [], []>} : vector<8x16xf32>, vector<16x4xf32>, vector<8x4xf32> -> vector<8x4xf32>
    %c0_28 = arith.constant 0 : index
    %c0_29 = arith.constant 0 : index
    %35 = vector.load %arg5[%c0_28, %c0_29] : memref<1x4xf32, #tpu.memory_space<vmem>>, vector<1x4xf32>
    %36 = vector.broadcast %35 : vector<1x4xf32> to vector<8x4xf32>
    %37 = arith.addf %34, %36 : vector<8x4xf32>
    %cst_30 = arith.constant dense<0xFF800000> : vector<8xf32>
    %38 = vector.multi_reduction <maximumf>, %37, %cst_30 [1] : vector<8x4xf32> to vector<8xf32>
    %39 = vector.shape_cast %38 : vector<8xf32> to vector<8x1xf32>
    %40 = vector.broadcast %39 : vector<8x1xf32> to vector<8x4xf32>
    %41 = arith.subf %37, %40 : vector<8x4xf32>
    %42 = math.exp %41 : vector<8x4xf32>
    %cst_31 = arith.constant dense<0.000000e+00> : vector<8xf32>
    %43 = vector.multi_reduction <add>, %42, %cst_31 [1] : vector<8x4xf32> to vector<8xf32>
    %44 = vector.shape_cast %43 : vector<8xf32> to vector<8x1xf32>
    %45 = math.log %44 : vector<8x1xf32>
    %46 = arith.addf %45, %39 : vector<8x1xf32>
    %47 = vector.broadcast %46 : vector<8x1xf32> to vector<8x4xf32>
    %48 = arith.subf %37, %47 : vector<8x4xf32>
    %c0_32 = arith.constant 0 : index
    %c0_33 = arith.constant 0 : index
    %49 = vector.load %arg6[%c0_32, %c0_33] : memref<8x4xf32, #tpu.memory_space<vmem>>, vector<8x4xf32>
    tpu.vector_store %arg6[%c0_32, %c0_33], %48 {strides = array<i32>} : memref<8x4xf32, #tpu.memory_space<vmem>>, vector<8x4xf32>,
    return
  }
  func.func @transform_0(%arg0: i32) -> (i32, i32, i32) {
    %c0_i32 = arith.constant 0 : i32
    %c0_i32_0 = arith.constant 0 : i32
    %c0_i32_1 = arith.constant 0 : i32
    return %c0_i32, %arg0, %c0_i32_0 : i32, i32, i32
  }
  func.func @transform_1(%arg0: i32) -> (i32, i32, i32, i32) {
    %c0_i32 = arith.constant 0 : i32
    %c0_i32_0 = arith.constant 0 : i32
    %c0_i32_1 = arith.constant 0 : i32
    %c0_i32_2 = arith.constant 0 : i32
    return %c0_i32, %arg0, %c0_i32_0, %c0_i32_1 : i32, i32, i32, i32
  }
  func.func @transform_2(%arg0: i32) -> (i32, i32, i32, i32) {
    %c0_i32 = arith.constant 0 : i32
    %c0_i32_0 = arith.constant 0 : i32
    %c0_i32_1 = arith.constant 0 : i32
    %c0_i32_2 = arith.constant 0 : i32
    return %c0_i32, %arg0, %c0_i32_0, %c0_i32_1 : i32, i32, i32, i32
  }
  func.func @transform_3(%arg0: i32) -> (i32, i32) {
    %c0_i32 = arith.constant 0 : i32
    %c0_i32_0 = arith.constant 0 : i32
    %c0_i32_1 = arith.constant 0 : i32
    return %c0_i32, %c0_i32_0 : i32, i32
  }
  func.func @transform_4(%arg0: i32) -> (i32, i32) {
    %c0_i32 = arith.constant 0 : i32
    %c0_i32_0 = arith.constant 0 : i32
    %c0_i32_1 = arith.constant 0 : i32
    return %c0_i32, %c0_i32_0 : i32, i32
  }
  func.func @transform_5(%arg0: i32) -> (i32, i32) {
    %c0_i32 = arith.constant 0 : i32
    %c0_i32_0 = arith.constant 0 : i32
    return %arg0, %c0_i32 : i32, i32
  }
}

</mosaic_0001>

<llo_original>
// kernel: neg.1
$region0: #{neg.1}
  #allocation0 [shape = 's32[1]{0}', space=sflag, size = 0x4, scoped, tag = 'scoped memory for neg.1']
  %s0 = inlined_call_operand.vmem [shape: f32[16,2], index: 0, kind: input, shape index: {}]
  %s1 = inlined_call_operand.vmem [shape: f32[16,2], index: 1, kind: output, shape index: {}]
  %v2 = vld [vmem:[%s0] sm:$0xff]
  %3 = xla_tuple %v2
  %4 = xla_tuple %3
  %v5 = vxor.u32 %v2, 2147483648
  %6 = xla_tuple %v5
  %7 = vst [vmem:[%s1] sm:$0xff] %v5
  %s8 = scalar_lea.vmem %s0, 8
  %v9 = vld [vmem:[%s8] sm:$0xff]
  %10 = xla_tuple %v9
  %11 = xla_tuple %10
  %v12 = vxor.u32 %v9, 2147483648
  %13 = xla_tuple %v12
  %s14 = scalar_lea.vmem %s1, 8
  %15 = vst [vmem:[%s14] sm:$0xff] %v12

// kernel: topk_cocn_forward.2
$region0: #{topk_cocn_forward.2}
  #allocation0 [shape = 'u32[]', space=smem, size = 0x4, offset = 0x4, fixed_abs, tag = 'smem constant byte address 0x4 - core index']
  #allocation1 [shape = 'u32[144,128]{1,0:T(1,128)}', space=vmem, size = 0x12000, scoped, tag = 'internal scratch']
  #allocation2 [shape = 'f32[16,2]{1,0:T(8,128)}', space=vmem, size = 0x2000, scoped, tag = 'scratch operand']
  %s0 = inlined_call_operand.vmem [shape: bf16[16,16], index: 0, kind: input, shape index: {}]
  %s1 = inlined_call_operand.vmem [shape: f32[16,8], index: 1, kind: input, shape index: {}]
  %s2 = inlined_call_operand.vmem [shape: f32[8,2], index: 2, kind: input, shape index: {}]
  %s3 = inlined_call_operand.vmem [shape: f32[16,2], index: 3, kind: output, shape index: {}]
  %s4 = sld [smem:[#allocation0]]
  $region30: #{topk_cocn_forward.2} parent=0
    _
  %s6 = ssub.s32 1, %s4
  %s7 = scalar_select 0, %s6, %s4
  // Predicated region
  $region2: #{topk_cocn_forward.2} parent=0 // pred_check
    _
  $region3: #{topk_cocn_forward.2} parent=0 // pred_check_branch
    %9 = sbr.rel (0) target = $region5
  $region4: #{topk_cocn_forward.2} parent=0 // pred_region
    _
  $region5: #{topk_cocn_forward.2} parent=0 // pred_fallthru
    _
  // Predicated region
  $region6: #{topk_cocn_forward.2} parent=0 // pred_check
    _
  $region7: #{topk_cocn_forward.2} parent=0 // pred_check_branch
    %11 = sbr.rel (0) target = $region9
  $region8: #{topk_cocn_forward.2} parent=0 // pred_region
    _
  $region9: #{topk_cocn_forward.2} parent=0 // pred_fallthru
    _
  // Predicated region
  $region10: #{topk_cocn_forward.2} parent=0 // pred_check
    _
  $region11: #{topk_cocn_forward.2} parent=0 // pred_check_branch
    %13 = sbr.rel (0) target = $region13
  $region12: #{topk_cocn_forward.2} parent=0 // pred_region
    _
  $region13: #{topk_cocn_forward.2} parent=0 // pred_fallthru
    _
  %p15 = scmp.eq.s32.totalorder 0, 0
  // Predicated region
  $region14: #{topk_cocn_forward.2} parent=0 // pred_check
    %p16 = pneg %p15
  $region15: #{topk_cocn_forward.2} parent=0 // pred_check_branch
    %18 = sbr.rel (%p16) target = $region17
  $region16: #{topk_cocn_forward.2} parent=0 // pred_region
    %vm19 = vcmask 15360
    %20 = vst.msk [vmem:[#allocation2] sm:$0xff] %vm19, 0.0
    %21 = vst.msk [vmem:[#allocation2 + $0x8] sm:$0xff] %vm19, 0.0
  $region17: #{topk_cocn_forward.2} parent=0 // pred_fallthru
    _
  %v22 = vld [vmem:[%s1] sm:$0xff]
  %v23 = vld [vmem:[%s1 + $0x8] sm:$0xff]
  %v24 = vld [vmem:[%s2] sm:$0xff]
  %vm25 = vcmask 64512
  %v27 = vsel %vm25, %v22, 0
  %v30 = vsel %vm25, %v23, 0
  %32 = vmatprep.subr.mxu0 0.0
  %33 = vmatpush1.msra.mxu0 %v24
  %34 = vmatprep.subr.mxu0 0.0
  %35 = vmatpush1.msra.mxu0 0.0
  %36 = vmatprep.subr.mxu0 0.0
  %37 = vmatpush1.msra.mxu0 0.0
  %38 = vmatprep.subr.mxu0 0.0
  %39 = vmatpush1.msra.mxu0 0.0
  %40 = vmatprep.subr.mxu0 0.0
  %41 = vmatpush1.msra.mxu0 0.0
  %42 = vmatprep.subr.mxu0 0.0
  %43 = vmatpush1.msra.mxu0 0.0
  %44 = vmatprep.subr.mxu0 0.0
  %45 = vmatpush1.msra.mxu0 0.0
  %46 = vmatprep.subr.mxu0 0.0
  %47 = vmatpush1.msra.mxu0 0.0
  %48 = vmatprep.subr.mxu0 0.0
  %49 = vmatpush1.msra.mxu0 0.0
  %50 = vmatprep.subr.mxu0 0.0
  %51 = vmatpush1.msra.mxu0 0.0
  %52 = vmatprep.subr.mxu0 0.0
  %53 = vmatpush1.msra.mxu0 0.0
  %54 = vmatprep.subr.mxu0 0.0
  %55 = vmatpush1.msra.mxu0 0.0
  %56 = vmatprep.subr.mxu0 0.0
  %57 = vmatpush1.msra.mxu0 0.0
  %58 = vmatprep.subr.mxu0 0.0
  %59 = vmatpush1.msra.mxu0 0.0
  %60 = vmatprep.subr.mxu0 0.0
  %61 = vmatpush1.msra.mxu0 0.0
  %62 = vmatprep.subr.mxu0 0.0
  %63 = vmatpush1.msra.mxu0 0.0
  %64 = vmatprep.subr.mxu0 0.0
  %65 = vmatpush1.msra.mxu0 0.0
  %66 = vmatprep.subr.mxu0 0.0
  %67 = vmatpush1.msra.mxu0 0.0
  %68 = vmatprep.subr.mxu0 0.0
  %69 = vmatpush1.msra.mxu0 0.0
  %70 = vmatprep.subr.mxu0 0.0
  %71 = vmatpush1.msra.mxu0 0.0
  %72 = vmatprep.subr.mxu0 0.0
  %73 = vmatpush1.msra.mxu0 0.0
  %74 = vmatprep.subr.mxu0 0.0
  %75 = vmatpush1.msra.mxu0 0.0
  %76 = vmatprep.subr.mxu0 0.0
  %77 = vmatpush1.msra.mxu0 0.0
  %78 = vmatprep.subr.mxu0 0.0
  %79 = vmatpush1.msra.mxu0 0.0
  %80 = vmatprep.subr.mxu0 0.0
  %81 = vmatpush1.msra.mxu0 0.0
  %82 = vmatprep.subr.mxu0 0.0
  %83 = vmatpush1.msra.mxu0 0.0
  %84 = vmatprep.subr.mxu0 0.0
  %85 = vmatpush1.msra.mxu0 0.0
  %86 = vmatprep.subr.mxu0 0.0
  %87 = vmatpush1.msra.mxu0 0.0
  %88 = vmatprep.subr.mxu0 0.0
  %89 = vmatpush1.msra.mxu0 0.0
  %90 = vmatprep.subr.mxu0 0.0
  %91 = vmatpush1.msra.mxu0 0.0
  %92 = vmatprep.subr.mxu0 0.0
  %93 = vmatpush1.msra.mxu0 0.0
  %94 = vmatprep.subr.mxu0 0.0
  %95 = vmatpush1.msra.mxu0 0.0
  %96 = vmatprep.mubr.f32.mxu0 0.0
  %97 = vmatmul.mubr.f32.gmra.mrb[0].mxu0 %v27
  %v98 = vpop.f32.mrb[0].mxu0
  %v99 = vadd.f32 0.0, %v98
  %v100 = vpop.f32.mrb[0].mxu0
  %101 = vmatprep.mubr.f32.mxu0 0.0
  %102 = vmatmul.mubr.f32.gmra.mrb[0].mxu0 %v30
  %v103 = vpop.f32.mrb[0].mxu0
  %v104 = vadd.f32 0.0, %v103
  %v105 = vpop.f32.mrb[0].mxu0
  %106 = vdwg.mxu0
  %v107 = vld [vmem:[#allocation2] sm:$0xff]
  %v108 = vld [vmem:[#allocation2 + $0x8] sm:$0xff]
  %v109 = vld [vmem:[%s0] sm:$0xf]
  %v110 = vld [vmem:[%s0 + $0x4] sm:$0xf]
  %v111 = vpack.c.bf16 %v104, %v99
  %v114 = vunpack.c.l.b16 %v109
  %v115 = vunpack.c.l.b16 %v110
  %v116 = vpack.c.b16 %v115, %v114
  %vm117 = vcmask 130048
  %v119 = vsel %vm117, %v116, 0
  %121 = vmatprep.subr.bf16.mxu0 0
  %122 = vmatpush1.bf16.msra.mxu0 %v111
  %123 = vmatprep.subr.bf16.mxu0 0
  %124 = vmatpush1.bf16.msra.mxu0 0
  %125 = vmatprep.subr.bf16.mxu0 0
  %126 = vmatpush1.bf16.msra.mxu0 0
  %127 = vmatprep.subr.bf16.mxu0 0
  %128 = vmatpush1.bf16.msra.mxu0 0
  %129 = vmatprep.subr.bf16.mxu0 0
  %130 = vmatpush1.bf16.msra.mxu0 0
  %131 = vmatprep.subr.bf16.mxu0 0
  %132 = vmatpush1.bf16.msra.mxu0 0
  %133 = vmatprep.subr.bf16.mxu0 0
  %134 = vmatpush1.bf16.msra.mxu0 0
  %135 = vmatprep.subr.bf16.mxu0 0
  %136 = vmatpush1.bf16.msra.mxu0 0
  %137 = vmatprep.subr.bf16.mxu0 0
  %138 = vmatpush1.bf16.msra.mxu0 0
  %139 = vmatprep.subr.bf16.mxu0 0
  %140 = vmatpush1.bf16.msra.mxu0 0
  %141 = vmatprep.subr.bf16.mxu0 0
  %142 = vmatpush1.bf16.msra.mxu0 0
  %143 = vmatprep.subr.bf16.mxu0 0
  %144 = vmatpush1.bf16.msra.mxu0 0
  %145 = vmatprep.subr.bf16.mxu0 0
  %146 = vmatpush1.bf16.msra.mxu0 0
  %147 = vmatprep.subr.bf16.mxu0 0
  %148 = vmatpush1.bf16.msra.mxu0 0
  %149 = vmatprep.subr.bf16.mxu0 0
  %150 = vmatpush1.bf16.msra.mxu0 0
  %151 = vmatprep.subr.bf16.mxu0 0
  %152 = vmatpush1.bf16.msra.mxu0 0
  %153 = vmatprep.mubr.bf16.mxu0 0
  %154 = vmatmul.mubr.bf16.gmra.mrb[0].mxu0 %v119
  %v155 = vpop.f32.mrb[0].mxu0
  %v156 = vadd.f32 0.0, %v155
  %v157 = vpop.f32.mrb[0].mxu0
  %v158 = vpop.f32.mrb[0].mxu0
  %v159 = vadd.f32 0.0, %v158
  %v160 = vpop.f32.mrb[0].mxu0
  %161 = vdwg.mxu0
  %v162 = vadd.f32 %v107, %v156
  %v163 = vadd.f32 %v108, %v159
  %vm164 = vcmask 15360
  %165 = vst.msk [vmem:[#allocation2] sm:$0xff] %vm164, %v162
  %166 = vst.msk [vmem:[#allocation2 + $0x8] sm:$0xff] %vm164, %v163
  // Predicated region
  $region18: #{topk_cocn_forward.2} parent=0 // pred_check
    %p167 = pneg %p15
  $region19: #{topk_cocn_forward.2} parent=0 // pred_check_branch
    %169 = sbr.rel (%p167) target = $region21
  $region20: #{topk_cocn_forward.2} parent=0 // pred_region
    %v170 = vld [vmem:[#allocation2] sm:$0xff]
    %v171 = vld [vmem:[#allocation2 + $0x8] sm:$0xff]
    %172 = vst.msk [vmem:[%s3] sm:$0xff] %vm164, %v170
    %173 = vst.msk [vmem:[%s3 + $0x8] sm:$0xff] %vm164, %v171
  $region21: #{topk_cocn_forward.2} parent=0 // pred_fallthru
    _
  // Predicated region
  $region22: #{topk_cocn_forward.2} parent=0 // pred_check
    _
  $region23: #{topk_cocn_forward.2} parent=0 // pred_check_branch
    %175 = sbr.rel (0) target = $region25
  $region24: #{topk_cocn_forward.2} parent=0 // pred_region
    _
  $region25: #{topk_cocn_forward.2} parent=0 // pred_fallthru
    _
  // Predicated region
  $region26: #{topk_cocn_forward.2} parent=0 // pred_check
    _
  $region27: #{topk_cocn_forward.2} parent=0 // pred_check_branch
    %177 = sbr.rel (0) target = $region29
  $region28: #{topk_cocn_forward.2} parent=0 // pred_region
    _
  $region29: #{topk_cocn_forward.2} parent=0 // pred_fallthru
    _

// kernel: topk_cocn_forward.3
$region0: #{topk_cocn_forward.3}
  #allocation0 [shape = 'u32[]', space=smem, size = 0x4, offset = 0x4, fixed_abs, tag = 'smem constant byte address 0x4 - core index']
  #allocation1 [shape = 'u32[144,128]{1,0:T(1,128)}', space=vmem, size = 0x12000, scoped, tag = 'internal scratch']
  %s0 = inlined_call_operand.vmem [shape: f32[2,8,8], index: 0, kind: input, shape index: {}]
  %s1 = inlined_call_operand.vmem [shape: f32[2,8,8,8], index: 1, kind: input, shape index: {}]
  %s2 = inlined_call_operand.vmem [shape: f32[2,8,8,8], index: 2, kind: input, shape index: {}]
  %s3 = inlined_call_operand.vmem [shape: f32[16,4], index: 3, kind: input, shape index: {}]
  %s4 = inlined_call_operand.vmem [shape: f32[1,4], index: 4, kind: input, shape index: {}]
  %s5 = inlined_call_operand.vmem [shape: f32[8,4], index: 5, kind: output, shape index: {}]
  %s6 = sld [smem:[#allocation0]]
  $region30: #{topk_cocn_forward.3} parent=0
    _
  %s8 = ssub.s32 1, %s6
  %s9 = scalar_select 0, %s8, %s6
  // Predicated region
  $region2: #{topk_cocn_forward.3} parent=0 // pred_check
    _
  $region3: #{topk_cocn_forward.3} parent=0 // pred_check_branch
    %11 = sbr.rel (0) target = $region5
  $region4: #{topk_cocn_forward.3} parent=0 // pred_region
    _
  $region5: #{topk_cocn_forward.3} parent=0 // pred_fallthru
    _
  // Predicated region
  $region6: #{topk_cocn_forward.3} parent=0 // pred_check
    _
  $region7: #{topk_cocn_forward.3} parent=0 // pred_check_branch
    %13 = sbr.rel (0) target = $region9
  $region8: #{topk_cocn_forward.3} parent=0 // pred_region
    _
  $region9: #{topk_cocn_forward.3} parent=0 // pred_fallthru
    _
  // Predicated region
  $region10: #{topk_cocn_forward.3} parent=0 // pred_check
    _
  $region11: #{topk_cocn_forward.3} parent=0 // pred_check_branch
    %15 = sbr.rel (0) target = $region13
  $region12: #{topk_cocn_forward.3} parent=0 // pred_region
    _
  $region13: #{topk_cocn_forward.3} parent=0 // pred_fallthru
    _
  // Predicated region
  $region14: #{topk_cocn_forward.3} parent=0 // pred_check
    _
  $region15: #{topk_cocn_forward.3} parent=0 // pred_check_branch
    %17 = sbr.rel (0) target = $region17
  $region16: #{topk_cocn_forward.3} parent=0 // pred_region
    _
  $region17: #{topk_cocn_forward.3} parent=0 // pred_fallthru
    _
  // Predicated region
  $region18: #{topk_cocn_forward.3} parent=0 // pred_check
    _
  $region19: #{topk_cocn_forward.3} parent=0 // pred_check_branch
    %19 = sbr.rel (0) target = $region21
  $region20: #{topk_cocn_forward.3} parent=0 // pred_region
    _
  $region21: #{topk_cocn_forward.3} parent=0 // pred_fallthru
    _
  %v20 = vld [vmem:[%s0] sm:$0xff]
  %v21 = vmul.f32 %v20, 0.125
  %v22 = vld [vmem:[%s1] sm:$0xff]
  %v23 = vld [vmem:[%s1 + $0x8] sm:$0xff]
  %v24 = vld [vmem:[%s1 + $0x10] sm:$0xff]
  %v25 = vld [vmem:[%s1 + $0x18] sm:$0xff]
  %v26 = vld [vmem:[%s1 + $0x20] sm:$0xff]
  %v27 = vld [vmem:[%s1 + $0x28] sm:$0xff]
  %v28 = vld [vmem:[%s1 + $0x30] sm:$0xff]
  %v29 = vld [vmem:[%s1 + $0x38] sm:$0xff]
  %v30 = vld [vmem:[%s2] sm:$0xff]
  %v31 = vld [vmem:[%s2 + $0x8] sm:$0xff]
  %v32 = vld [vmem:[%s2 + $0x10] sm:$0xff]
  %v33 = vld [vmem:[%s2 + $0x18] sm:$0xff]
  %v34 = vld [vmem:[%s2 + $0x20] sm:$0xff]
  %v35 = vld [vmem:[%s2 + $0x28] sm:$0xff]
  %v36 = vld [vmem:[%s2 + $0x30] sm:$0xff]
  %v37 = vld [vmem:[%s2 + $0x38] sm:$0xff]
  %v38 = vlaneseq
  %v39 = vshrl.u32 %v38, 7
  %v40 = vsub.s32 0, %v39
  %v41 = vrot.slane %v21, %v40
  %43 = vbcast.lane.b32.xlu0 %v41, 256
  %v44 = vpop.permute.xlu0 %43
  %v45 = vlaneseq
  %v46 = vshrl.u32 %v45, 7
  %v47 = vsub.s32 1, %v46
  %v48 = vrot.slane %v21, %v47
  %50 = vbcast.lane.b32.xlu0 %v48, 256
  %v51 = vpop.permute.xlu0 %50
  %v52 = vlaneseq
  %v53 = vshrl.u32 %v52, 7
  %v54 = vsub.s32 2, %v53
  %v55 = vrot.slane %v21, %v54
  %57 = vbcast.lane.b32.xlu0 %v55, 256
  %v58 = vpop.permute.xlu0 %57
  %v59 = vlaneseq
  %v60 = vshrl.u32 %v59, 7
  %v61 = vsub.s32 3, %v60
  %v62 = vrot.slane %v21, %v61
  %64 = vbcast.lane.b32.xlu0 %v62, 256
  %v65 = vpop.permute.xlu0 %64
  %v66 = vlaneseq
  %v67 = vshrl.u32 %v66, 7
  %v68 = vsub.s32 4, %v67
  %v69 = vrot.slane %v21, %v68
  %71 = vbcast.lane.b32.xlu0 %v69, 256
  %v72 = vpop.permute.xlu0 %71
  %v73 = vlaneseq
  %v74 = vshrl.u32 %v73, 7
  %v75 = vsub.s32 5, %v74
  %v76 = vrot.slane %v21, %v75
  %78 = vbcast.lane.b32.xlu0 %v76, 256
  %v79 = vpop.permute.xlu0 %78
  %v80 = vlaneseq
  %v81 = vshrl.u32 %v80, 7
  %v82 = vsub.s32 6, %v81
  %v83 = vrot.slane %v21, %v82
  %85 = vbcast.lane.b32.xlu0 %v83, 256
  %v86 = vpop.permute.xlu0 %85
  %v87 = vlaneseq
  %v88 = vshrl.u32 %v87, 7
  %v89 = vsub.s32 7, %v88
  %v90 = vrot.slane %v21, %v89
  %92 = vbcast.lane.b32.xlu0 %v90, 256
  %v93 = vpop.permute.xlu0 %92
  %v94 = vmul.f32 %v44, %v22
  %v95 = vmul.f32 %v51, %v23
  %v96 = vmul.f32 %v58, %v24
  %v97 = vmul.f32 %v65, %v25
  %v98 = vmul.f32 %v72, %v26
  %v99 = vmul.f32 %v79, %v27
  %v100 = vmul.f32 %v86, %v28
  %v101 = vmul.f32 %v93, %v29
  %vm102 = vcmask 64512
  %v103 = vsel %vm102, %v94, 0.0
  %v104 = vrot.slane %v103, 4
  %v105 = vadd.f32 %v103, %v104
  %v106 = vrot.slane %v105, 2
  %v107 = vadd.f32 %v105, %v106
  %v108 = vrot.slane %v107, 1
  %v109 = vadd.f32 %v107, %v108
  %v110 = vsel %vm102, %v95, 0.0
  %v111 = vrot.slane %v110, 4
  %v112 = vadd.f32 %v110, %v111
  %v113 = vrot.slane %v112, 2
  %v114 = vadd.f32 %v112, %v113
  %v115 = vrot.slane %v114, 1
  %v116 = vadd.f32 %v114, %v115
  %v117 = vsel %vm102, %v96, 0.0
  %v118 = vrot.slane %v117, 4
  %v119 = vadd.f32 %v117, %v118
  %v120 = vrot.slane %v119, 2
  %v121 = vadd.f32 %v119, %v120
  %v122 = vrot.slane %v121, 1
  %v123 = vadd.f32 %v121, %v122
  %v124 = vsel %vm102, %v97, 0.0
  %v125 = vrot.slane %v124, 4
  %v126 = vadd.f32 %v124, %v125
  %v127 = vrot.slane %v126, 2
  %v128 = vadd.f32 %v126, %v127
  %v129 = vrot.slane %v128, 1
  %v130 = vadd.f32 %v128, %v129
  %v131 = vsel %vm102, %v98, 0.0
  %v132 = vrot.slane %v131, 4
  %v133 = vadd.f32 %v131, %v132
  %v134 = vrot.slane %v133, 2
  %v135 = vadd.f32 %v133, %v134
  %v136 = vrot.slane %v135, 1
  %v137 = vadd.f32 %v135, %v136
  %v138 = vsel %vm102, %v99, 0.0
  %v139 = vrot.slane %v138, 4
  %v140 = vadd.f32 %v138, %v139
  %v141 = vrot.slane %v140, 2
  %v142 = vadd.f32 %v140, %v141
  %v143 = vrot.slane %v142, 1
  %v144 = vadd.f32 %v142, %v143
  %v145 = vsel %vm102, %v100, 0.0
  %v146 = vrot.slane %v145, 4
  %v147 = vadd.f32 %v145, %v146
  %v148 = vrot.slane %v147, 2
  %v149 = vadd.f32 %v147, %v148
  %v150 = vrot.slane %v149, 1
  %v151 = vadd.f32 %v149, %v150
  %v152 = vsel %vm102, %v101, 0.0
  %v153 = vrot.slane %v152, 4
  %v154 = vadd.f32 %v152, %v153
  %v155 = vrot.slane %v154, 2
  %v156 = vadd.f32 %v154, %v155
  %v157 = vrot.slane %v156, 1
  %v158 = vadd.f32 %v156, %v157
  %160 = vbcast.lane.b32.xlu0 %v109, 256
  %v161 = vpop.permute.xlu0 %160
  %163 = vbcast.lane.b32.xlu0 %v116, 256
  %v164 = vpop.permute.xlu0 %163
  %166 = vbcast.lane.b32.xlu0 %v123, 256
  %v167 = vpop.permute.xlu0 %166
  %169 = vbcast.lane.b32.xlu0 %v130, 256
  %v170 = vpop.permute.xlu0 %169
  %172 = vbcast.lane.b32.xlu0 %v137, 256
  %v173 = vpop.permute.xlu0 %172
  %175 = vbcast.lane.b32.xlu0 %v144, 256
  %v176 = vpop.permute.xlu0 %175
  %178 = vbcast.lane.b32.xlu0 %v151, 256
  %v179 = vpop.permute.xlu0 %178
  %181 = vbcast.lane.b32.xlu0 %v158, 256
  %v182 = vpop.permute.xlu0 %181
  %v183 = vmul.f32 %v161, %v30
  %v184 = vmul.f32 %v164, %v31
  %v185 = vmul.f32 %v167, %v32
  %v186 = vmul.f32 %v170, %v33
  %v187 = vmul.f32 %v173, %v34
  %v188 = vmul.f32 %v176, %v35
  %v189 = vmul.f32 %v179, %v36
  %v190 = vmul.f32 %v182, %v37
  %v191 = vsel %vm102, %v183, 0.0
  %v192 = vrot.slane %v191, 4
  %v193 = vadd.f32 %v191, %v192
  %v194 = vrot.slane %v193, 2
  %v195 = vadd.f32 %v193, %v194
  %v196 = vrot.slane %v195, 1
  %v197 = vadd.f32 %v195, %v196
  %v198 = vsel %vm102, %v184, 0.0
  %v199 = vrot.slane %v198, 4
  %v200 = vadd.f32 %v198, %v199
  %v201 = vrot.slane %v200, 2
  %v202 = vadd.f32 %v200, %v201
  %v203 = vrot.slane %v202, 1
  %v204 = vadd.f32 %v202, %v203
  %v205 = vsel %vm102, %v185, 0.0
  %v206 = vrot.slane %v205, 4
  %v207 = vadd.f32 %v205, %v206
  %v208 = vrot.slane %v207, 2
  %v209 = vadd.f32 %v207, %v208
  %v210 = vrot.slane %v209, 1
  %v211 = vadd.f32 %v209, %v210
  %v212 = vsel %vm102, %v186, 0.0
  %v213 = vrot.slane %v212, 4
  %v214 = vadd.f32 %v212, %v213
  %v215 = vrot.slane %v214, 2
  %v216 = vadd.f32 %v214, %v215
  %v217 = vrot.slane %v216, 1
  %v218 = vadd.f32 %v216, %v217
  %v219 = vsel %vm102, %v187, 0.0
  %v220 = vrot.slane %v219, 4
  %v221 = vadd.f32 %v219, %v220
  %v222 = vrot.slane %v221, 2
  %v223 = vadd.f32 %v221, %v222
  %v224 = vrot.slane %v223, 1
  %v225 = vadd.f32 %v223, %v224
  %v226 = vsel %vm102, %v188, 0.0
  %v227 = vrot.slane %v226, 4
  %v228 = vadd.f32 %v226, %v227
  %v229 = vrot.slane %v228, 2
  %v230 = vadd.f32 %v228, %v229
  %v231 = vrot.slane %v230, 1
  %v232 = vadd.f32 %v230, %v231
  %v233 = vsel %vm102, %v189, 0.0
  %v234 = vrot.slane %v233, 4
  %v235 = vadd.f32 %v233, %v234
  %v236 = vrot.slane %v235, 2
  %v237 = vadd.f32 %v235, %v236
  %v238 = vrot.slane %v237, 1
  %v239 = vadd.f32 %v237, %v238
  %v240 = vsel %vm102, %v190, 0.0
  %v241 = vrot.slane %v240, 4
  %v242 = vadd.f32 %v240, %v241
  %v243 = vrot.slane %v242, 2
  %v244 = vadd.f32 %v242, %v243
  %v245 = vrot.slane %v244, 1
  %v246 = vadd.f32 %v244, %v245
  %s247 = scalar_lea.vmem %s0, 8
  %v248 = vld [vmem:[%s247] sm:$0xff]
  %v249 = vmul.f32 %v248, 0.125
  %s250 = scalar_lea.vmem %s1, 64
  %v251 = vld [vmem:[%s250] sm:$0xff]
  %v252 = vld [vmem:[%s250 + $0x8] sm:$0xff]
  %v253 = vld [vmem:[%s250 + $0x10] sm:$0xff]
  %v254 = vld [vmem:[%s250 + $0x18] sm:$0xff]
  %v255 = vld [vmem:[%s250 + $0x20] sm:$0xff]
  %v256 = vld [vmem:[%s250 + $0x28] sm:$0xff]
  %v257 = vld [vmem:[%s250 + $0x30] sm:$0xff]
  %v258 = vld [vmem:[%s250 + $0x38] sm:$0xff]
  %s259 = scalar_lea.vmem %s2, 64
  %v260 = vld [vmem:[%s259] sm:$0xff]
  %v261 = vld [vmem:[%s259 + $0x8] sm:$0xff]
  %v262 = vld [vmem:[%s259 + $0x10] sm:$0xff]
  %v263 = vld [vmem:[%s259 + $0x18] sm:$0xff]
  %v264 = vld [vmem:[%s259 + $0x20] sm:$0xff]
  %v265 = vld [vmem:[%s259 + $0x28] sm:$0xff]
  %v266 = vld [vmem:[%s259 + $0x30] sm:$0xff]
  %v267 = vld [vmem:[%s259 + $0x38] sm:$0xff]
  %v268 = vlaneseq
  %v269 = vshrl.u32 %v268, 7
  %v270 = vsub.s32 0, %v269
  %v271 = vrot.slane %v249, %v270
  %273 = vbcast.lane.b32.xlu0 %v271, 256
  %v274 = vpop.permute.xlu0 %273
  %v275 = vlaneseq
  %v276 = vshrl.u32 %v275, 7
  %v277 = vsub.s32 1, %v276
  %v278 = vrot.slane %v249, %v277
  %280 = vbcast.lane.b32.xlu0 %v278, 256
  %v281 = vpop.permute.xlu0 %280
  %v282 = vlaneseq
  %v283 = vshrl.u32 %v282, 7
  %v284 = vsub.s32 2, %v283
  %v285 = vrot.slane %v249, %v284
  %287 = vbcast.lane.b32.xlu0 %v285, 256
  %v288 = vpop.permute.xlu0 %287
  %v289 = vlaneseq
  %v290 = vshrl.u32 %v289, 7
  %v291 = vsub.s32 3, %v290
  %v292 = vrot.slane %v249, %v291
  %294 = vbcast.lane.b32.xlu0 %v292, 256
  %v295 = vpop.permute.xlu0 %294
  %v296 = vlaneseq
  %v297 = vshrl.u32 %v296, 7
  %v298 = vsub.s32 4, %v297
  %v299 = vrot.slane %v249, %v298
  %301 = vbcast.lane.b32.xlu0 %v299, 256
  %v302 = vpop.permute.xlu0 %301
  %v303 = vlaneseq
  %v304 = vshrl.u32 %v303, 7
  %v305 = vsub.s32 5, %v304
  %v306 = vrot.slane %v249, %v305
  %308 = vbcast.lane.b32.xlu0 %v306, 256
  %v309 = vpop.permute.xlu0 %308
  %v310 = vlaneseq
  %v311 = vshrl.u32 %v310, 7
  %v312 = vsub.s32 6, %v311
  %v313 = vrot.slane %v249, %v312
  %315 = vbcast.lane.b32.xlu0 %v313, 256
  %v316 = vpop.permute.xlu0 %315
  %v317 = vlaneseq
  %v318 = vshrl.u32 %v317, 7
  %v319 = vsub.s32 7, %v318
  %v320 = vrot.slane %v249, %v319
  %322 = vbcast.lane.b32.xlu0 %v320, 256
  %v323 = vpop.permute.xlu0 %322
  %v324 = vmul.f32 %v274, %v251
  %v325 = vmul.f32 %v281, %v252
  %v326 = vmul.f32 %v288, %v253
  %v327 = vmul.f32 %v295, %v254
  %v328 = vmul.f32 %v302, %v255
  %v329 = vmul.f32 %v309, %v256
  %v330 = vmul.f32 %v316, %v257
  %v331 = vmul.f32 %v323, %v258
  %v332 = vsel %vm102, %v324, 0.0
  %v333 = vrot.slane %v332, 4
  %v334 = vadd.f32 %v332, %v333
  %v335 = vrot.slane %v334, 2
  %v336 = vadd.f32 %v334, %v335
  %v337 = vrot.slane %v336, 1
  %v338 = vadd.f32 %v336, %v337
  %v339 = vsel %vm102, %v325, 0.0
  %v340 = vrot.slane %v339, 4
  %v341 = vadd.f32 %v339, %v340
  %v342 = vrot.slane %v341, 2
  %v343 = vadd.f32 %v341, %v342
  %v344 = vrot.slane %v343, 1
  %v345 = vadd.f32 %v343, %v344
  %v346 = vsel %vm102, %v326, 0.0
  %v347 = vrot.slane %v346, 4
  %v348 = vadd.f32 %v346, %v347
  %v349 = vrot.slane %v348, 2
  %v350 = vadd.f32 %v348, %v349
  %v351 = vrot.slane %v350, 1
  %v352 = vadd.f32 %v350, %v351
  %v353 = vsel %vm102, %v327, 0.0
  %v354 = vrot.slane %v353, 4
  %v355 = vadd.f32 %v353, %v354
  %v356 = vrot.slane %v355, 2
  %v357 = vadd.f32 %v355, %v356
  %v358 = vrot.slane %v357, 1
  %v359 = vadd.f32 %v357, %v358
  %v360 = vsel %vm102, %v328, 0.0
  %v361 = vrot.slane %v360, 4
  %v362 = vadd.f32 %v360, %v361
  %v363 = vrot.slane %v362, 2
  %v364 = vadd.f32 %v362, %v363
  %v365 = vrot.slane %v364, 1
  %v366 = vadd.f32 %v364, %v365
  %v367 = vsel %vm102, %v329, 0.0
  %v368 = vrot.slane %v367, 4
  %v369 = vadd.f32 %v367, %v368
  %v370 = vrot.slane %v369, 2
  %v371 = vadd.f32 %v369, %v370
  %v372 = vrot.slane %v371, 1
  %v373 = vadd.f32 %v371, %v372
  %v374 = vsel %vm102, %v330, 0.0
  %v375 = vrot.slane %v374, 4
  %v376 = vadd.f32 %v374, %v375
  %v377 = vrot.slane %v376, 2
  %v378 = vadd.f32 %v376, %v377
  %v379 = vrot.slane %v378, 1
  %v380 = vadd.f32 %v378, %v379
  %v381 = vsel %vm102, %v331, 0.0
  %v382 = vrot.slane %v381, 4
  %v383 = vadd.f32 %v381, %v382
  %v384 = vrot.slane %v383, 2
  %v385 = vadd.f32 %v383, %v384
  %v386 = vrot.slane %v385, 1
  %v387 = vadd.f32 %v385, %v386
  %389 = vbcast.lane.b32.xlu0 %v338, 256
  %v390 = vpop.permute.xlu0 %389
  %392 = vbcast.lane.b32.xlu0 %v345, 256
  %v393 = vpop.permute.xlu0 %392
  %395 = vbcast.lane.b32.xlu0 %v352, 256
  %v396 = vpop.permute.xlu0 %395
  %398 = vbcast.lane.b32.xlu0 %v359, 256
  %v399 = vpop.permute.xlu0 %398
  %401 = vbcast.lane.b32.xlu0 %v366, 256
  %v402 = vpop.permute.xlu0 %401
  %404 = vbcast.lane.b32.xlu0 %v373, 256
  %v405 = vpop.permute.xlu0 %404
  %407 = vbcast.lane.b32.xlu0 %v380, 256
  %v408 = vpop.permute.xlu0 %407
  %410 = vbcast.lane.b32.xlu0 %v387, 256
  %v411 = vpop.permute.xlu0 %410
  %v412 = vmul.f32 %v390, %v260
  %v413 = vmul.f32 %v393, %v261
  %v414 = vmul.f32 %v396, %v262
  %v415 = vmul.f32 %v399, %v263
  %v416 = vmul.f32 %v402, %v264
  %v417 = vmul.f32 %v405, %v265
  %v418 = vmul.f32 %v408, %v266
  %v419 = vmul.f32 %v411, %v267
  %v420 = vsel %vm102, %v412, 0.0
  %v421 = vrot.slane %v420, 4
  %v422 = vadd.f32 %v420, %v421
  %v423 = vrot.slane %v422, 2
  %v424 = vadd.f32 %v422, %v423
  %v425 = vrot.slane %v424, 1
  %v426 = vadd.f32 %v424, %v425
  %v427 = vsel %vm102, %v413, 0.0
  %v428 = vrot.slane %v427, 4
  %v429 = vadd.f32 %v427, %v428
  %v430 = vrot.slane %v429, 2
  %v431 = vadd.f32 %v429, %v430
  %v432 = vrot.slane %v431, 1
  %v433 = vadd.f32 %v431, %v432
  %v434 = vsel %vm102, %v414, 0.0
  %v435 = vrot.slane %v434, 4
  %v436 = vadd.f32 %v434, %v435
  %v437 = vrot.slane %v436, 2
  %v438 = vadd.f32 %v436, %v437
  %v439 = vrot.slane %v438, 1
  %v440 = vadd.f32 %v438, %v439
  %v441 = vsel %vm102, %v415, 0.0
  %v442 = vrot.slane %v441, 4
  %v443 = vadd.f32 %v441, %v442
  %v444 = vrot.slane %v443, 2
  %v445 = vadd.f32 %v443, %v444
  %v446 = vrot.slane %v445, 1
  %v447 = vadd.f32 %v445, %v446
  %v448 = vsel %vm102, %v416, 0.0
  %v449 = vrot.slane %v448, 4
  %v450 = vadd.f32 %v448, %v449
  %v451 = vrot.slane %v450, 2
  %v452 = vadd.f32 %v450, %v451
  %v453 = vrot.slane %v452, 1
  %v454 = vadd.f32 %v452, %v453
  %v455 = vsel %vm102, %v417, 0.0
  %v456 = vrot.slane %v455, 4
  %v457 = vadd.f32 %v455, %v456
  %v458 = vrot.slane %v457, 2
  %v459 = vadd.f32 %v457, %v458
  %v460 = vrot.slane %v459, 1
  %v461 = vadd.f32 %v459, %v460
  %v462 = vsel %vm102, %v418, 0.0
  %v463 = vrot.slane %v462, 4
  %v464 = vadd.f32 %v462, %v463
  %v465 = vrot.slane %v464, 2
  %v466 = vadd.f32 %v464, %v465
  %v467 = vrot.slane %v466, 1
  %v468 = vadd.f32 %v466, %v467
  %v469 = vsel %vm102, %v419, 0.0
  %v470 = vrot.slane %v469, 4
  %v471 = vadd.f32 %v469, %v470
  %v472 = vrot.slane %v471, 2
  %v473 = vadd.f32 %v471, %v472
  %v474 = vrot.slane %v473, 1
  %v475 = vadd.f32 %v473, %v474
  %vm484 = vcmask 1041409
  %v485 = vsel %vm484, %v204, %v197
  %vm486 = vcmask 1042434
  %v487 = vsel %vm486, %v211, %v485
  %vm488 = vcmask 1043459
  %v489 = vsel %vm488, %v218, %v487
  %vm490 = vcmask 1044484
  %v491 = vsel %vm490, %v225, %v489
  %vm492 = vcmask 1045509
  %v493 = vsel %vm492, %v232, %v491
  %vm494 = vcmask 1046534
  %v495 = vsel %vm494, %v239, %v493
  %vm496 = vcmask 1047559
  %v497 = vsel %vm496, %v246, %v495
  %v507 = vsel %vm484, %v433, %v426
  %v508 = vsel %vm486, %v440, %v507
  %v509 = vsel %vm488, %v447, %v508
  %v510 = vsel %vm490, %v454, %v509
  %v511 = vsel %vm492, %v461, %v510
  %v512 = vsel %vm494, %v468, %v511
  %v513 = vsel %vm496, %v475, %v512
  %514 = vrot.lane.b32.xlu0 %v513, 8
  %v515 = vpop.permute.xlu0 %514
  %v517 = vsel %vm102, %v497, %v515
  %v518 = vld [vmem:[%s3] sm:$0xff]
  %v519 = vld [vmem:[%s3 + $0x8] sm:$0xff]
  %v520 = vld [vmem:[%s4] sm:$0x1]
  %v522 = vlaneseq
  %v523 = vshrl.u32 %v522, 7
  %v524 = vsub.s32 0, %v523
  %v525 = vrot.slane %v520, %v524
  %vm527 = vcmask 130048
  %v529 = vsel %vm527, %v517, 0
  %531 = vmatprep.subr.mxu0 0.0
  %532 = vmatpush1.msra.mxu0 %v518
  %533 = vmatprep.subr.mxu0 0.0
  %534 = vmatpush1.msra.mxu0 %v519
  %535 = vmatprep.subr.mxu0 0.0
  %536 = vmatpush1.msra.mxu0 0.0
  %537 = vmatprep.subr.mxu0 0.0
  %538 = vmatpush1.msra.mxu0 0.0
  %539 = vmatprep.subr.mxu0 0.0
  %540 = vmatpush1.msra.mxu0 0.0
  %541 = vmatprep.subr.mxu0 0.0
  %542 = vmatpush1.msra.mxu0 0.0
  %543 = vmatprep.subr.mxu0 0.0
  %544 = vmatpush1.msra.mxu0 0.0
  %545 = vmatprep.subr.mxu0 0.0
  %546 = vmatpush1.msra.mxu0 0.0
  %547 = vmatprep.subr.mxu0 0.0
  %548 = vmatpush1.msra.mxu0 0.0
  %549 = vmatprep.subr.mxu0 0.0
  %550 = vmatpush1.msra.mxu0 0.0
  %551 = vmatprep.subr.mxu0 0.0
  %552 = vmatpush1.msra.mxu0 0.0
  %553 = vmatprep.subr.mxu0 0.0
  %554 = vmatpush1.msra.mxu0 0.0
  %555 = vmatprep.subr.mxu0 0.0
  %556 = vmatpush1.msra.mxu0 0.0
  %557 = vmatprep.subr.mxu0 0.0
  %558 = vmatpush1.msra.mxu0 0.0
  %559 = vmatprep.subr.mxu0 0.0
  %560 = vmatpush1.msra.mxu0 0.0
  %561 = vmatprep.subr.mxu0 0.0
  %562 = vmatpush1.msra.mxu0 0.0
  %563 = vmatprep.subr.mxu0 0.0
  %564 = vmatpush1.msra.mxu0 0.0
  %565 = vmatprep.subr.mxu0 0.0
  %566 = vmatpush1.msra.mxu0 0.0
  %567 = vmatprep.subr.mxu0 0.0
  %568 = vmatpush1.msra.mxu0 0.0
  %569 = vmatprep.subr.mxu0 0.0
  %570 = vmatpush1.msra.mxu0 0.0
  %571 = vmatprep.subr.mxu0 0.0
  %572 = vmatpush1.msra.mxu0 0.0
  %573 = vmatprep.subr.mxu0 0.0
  %574 = vmatpush1.msra.mxu0 0.0
  %575 = vmatprep.subr.mxu0 0.0
  %576 = vmatpush1.msra.mxu0 0.0
  %577 = vmatprep.subr.mxu0 0.0
  %578 = vmatpush1.msra.mxu0 0.0
  %579 = vmatprep.subr.mxu0 0.0
  %580 = vmatpush1.msra.mxu0 0.0
  %581 = vmatprep.subr.mxu0 0.0
  %582 = vmatpush1.msra.mxu0 0.0
  %583 = vmatprep.subr.mxu0 0.0
  %584 = vmatpush1.msra.mxu0 0.0
  %585 = vmatprep.subr.mxu0 0.0
  %586 = vmatpush1.msra.mxu0 0.0
  %587 = vmatprep.subr.mxu0 0.0
  %588 = vmatpush1.msra.mxu0 0.0
  %589 = vmatprep.subr.mxu0 0.0
  %590 = vmatpush1.msra.mxu0 0.0
  %591 = vmatprep.subr.mxu0 0.0
  %592 = vmatpush1.msra.mxu0 0.0
  %593 = vmatprep.subr.mxu0 0.0
  %594 = vmatpush1.msra.mxu0 0.0
  %595 = vmatprep.mubr.f32.mxu0 0.0
  %596 = vmatmul.mubr.f32.gmra.mrb[0].mxu0 %v529
  %v597 = vpop.f32.mrb[0].mxu0
  %v598 = vadd.f32 %v525, %v597
  %v599 = vpop.f32.mrb[0].mxu0
  %600 = vdwg.mxu0
  %vm601 = vcmask 31744
  %v602 = vsel %vm601, %v598, -inf
  %603 = vmax.xlane.f32.xlu0 %v602
  %v604 = vpop.xlane.xlu0 %603
  %v605 = vsub.f32 %v598, %v604
  %v606 = vmul.f32 %v605, 1.442695
  %v607 = vpow.pop %v606
  %v608 = vsel %vm601, %v607, 0.0
  %609 = vadd.xlane.f32.xlu0 %v608
  %v610 = vpop.xlane.xlu0 %609
  %v611 = vlog2.pop %v610
  %v612 = vmul.f32 %v611, 0.6931472
  %v613 = vadd.f32 %v612, %v604
  %v614 = vsub.f32 %v598, %v613
  %615 = vst.msk [vmem:[%s5] sm:$0xff] %vm601, %v614
  // Predicated region
  $region22: #{topk_cocn_forward.3} parent=0 // pred_check
    _
  $region23: #{topk_cocn_forward.3} parent=0 // pred_check_branch
    %617 = sbr.rel (0) target = $region25
  $region24: #{topk_cocn_forward.3} parent=0 // pred_region
    _
  $region25: #{topk_cocn_forward.3} parent=0 // pred_fallthru
    _
  // Predicated region
  $region26: #{topk_cocn_forward.3} parent=0 // pred_check
    _
  $region27: #{topk_cocn_forward.3} parent=0 // pred_check_branch
    %619 = sbr.rel (0) target = $region29
  $region28: #{topk_cocn_forward.3} parent=0 // pred_region
    _
  $region29: #{topk_cocn_forward.3} parent=0 // pred_fallthru
    _

</llo_original>
